<compile_context>
chip_gen: v7x
topology: tpu7x:2x2x1
jax: 0.10.0
libtpu: 0.0.40
codegen_flags: <defaults>
</compile_context>

<pallas_src>
import math

import jax
import jax.numpy as jnp
from jax.experimental import pallas as pl
from jax.experimental.pallas import tpu as pltpu

# TODO(synk): torch casts to float64; TPU Pallas has no f64, so features and the
# MSE accumulation are float32 (per-tile partial sums keep the error small).
FEATURE_DTYPE = jnp.float32

_LANES = 128
_TARGET_ROWS = 2048  # ~1 MiB of f32 per (rows, 128) operand block per grid step


# ----------------------------------------------------------------------------
# Tiling plan: block = (NB images, TR rows, 128 lanes).
#   * large images: NB=1, TR=2048 (rows padded to a multiple of TR)
#   * small images: TR=R (full extent), NB = largest divisor of N with
#     NB*R ~<= 2048 rows  -> no block clamping anywhere.
# ----------------------------------------------------------------------------
def _plan_tiles(N, D):
    R = pl.cdiv(D, _LANES)
    if R >= _TARGET_ROWS:
        TR, NB = _TARGET_ROWS, 1
    else:
        TR = R
        want = max(1, _TARGET_ROWS // max(R, 1))
        NB = 1
        for cand in range(min(N, want), 0, -1):  # largest divisor of N <= want
            if N % cand == 0:
                NB = cand
                break
    R_pad = pl.cdiv(R, TR) * TR
    return NB, TR, R_pad


def _to_slab(images_4d):
    """(N, C, H, W) -> zero-padded lane-dense (N, R_pad, 128) plus tile plan."""
    N = images_4d.shape[0]
    D = math.prod(images_4d.shape[1:])
    NB, TR, R_pad = _plan_tiles(N, D)
    flat = images_4d.reshape(N, D)
    pad = R_pad * _LANES - D
    if pad:
        flat = jnp.pad(flat, ((0, 0), (0, pad)))  # zeros: contribute 0 to the MSE
    return flat.reshape(N, R_pad, _LANES), NB, TR


# ----------------------------------------------------------------------------
# Kernel bodies
# ----------------------------------------------------------------------------
def _cast_kernel(x_ref, o_ref):
    # calc_features (identity) + dtype widening, realized as a tiled cast/copy.
    o_ref[...] = x_ref[...].astype(o_ref.dtype)


def _mse_kernel(a_ref, b_ref, o_ref):
    # o_ref: (1, NB, 128) per-lane partial sums, resident across the R axis.
    @pl.when(pl.program_id(1) == 0)
    def _():
        o_ref[...] = jnp.zeros_like(o_ref)

    d = a_ref[...].astype(jnp.float32) - b_ref[...].astype(jnp.float32)
    o_ref[...] += jnp.sum(d * d, axis=1).reshape(o_ref.shape)


def _fused_cast_mse_kernel(a_ref, b_ref, fa_ref, fb_ref, o_ref):
    # Single HBM pass: read a/b, write f32 features, accumulate per-image SSQ.
    fa = a_ref[...].astype(FEATURE_DTYPE)
    fb = b_ref[...].astype(FEATURE_DTYPE)
    fa_ref[...] = fa
    fb_ref[...] = fb

    @pl.when(pl.program_id(1) == 0)
    def _():
        o_ref[...] = jnp.zeros_like(o_ref)

    d = fa - fb
    o_ref[...] += jnp.sum(d * d, axis=1).reshape(o_ref.shape)


# ----------------------------------------------------------------------------
# pallas_call wrappers
# ----------------------------------------------------------------------------
def _pallas_cast_features(images_4d):
    """Tiled widening cast (N,C,H,W) -> float32 features, same shape."""
    N = images_4d.shape[0]
    spatial = images_4d.shape[1:]
    D = math.prod(spatial)
    slab, NB, TR = _to_slab(images_4d)
    R_pad = slab.shape[1]
    nN, nR = N // NB, R_pad // TR
    out = pl.pallas_call(
        _cast_kernel,
        out_shape=jax.ShapeDtypeStruct((N, R_pad, _LANES), FEATURE_DTYPE),
        grid=(nN, nR),
        in_specs=[pl.BlockSpec((NB, TR, _LANES), lambda i, r: (i, r, 0))],
        out_specs=pl.BlockSpec((NB, TR, _LANES), lambda i, r: (i, r, 0)),
        compiler_params=pltpu.CompilerParams(
            dimension_semantics=("parallel", "parallel")),
    )(slab)
    return out.reshape(N, R_pad * _LANES)[:, :D].reshape((N,) + spatial)


def _pallas_mse(features_a, features_b):
    """Per-image MSE over (N,C,H,W) features -> (N,)."""
    assert features_a.shape == features_b.shape
    N = features_a.shape[0]
    D = math.prod(features_a.shape[1:])
    sa, NB, TR = _to_slab(features_a)
    sb, _, _ = _to_slab(features_b)
    R_pad = sa.shape[1]
    nN, nR = N // NB, R_pad // TR
    img_spec = pl.BlockSpec((NB, TR, _LANES), lambda i, r: (i, r, 0))
    acc = pl.pallas_call(
        _mse_kernel,
        out_shape=jax.ShapeDtypeStruct((nN, NB, _LANES), jnp.float32),
        grid=(nN, nR),
        in_specs=[img_spec, img_spec],
        out_specs=pl.BlockSpec((1, NB, _LANES), lambda i, r: (i, 0, 0)),
        compiler_params=pltpu.CompilerParams(
            dimension_semantics=("parallel", "arbitrary")),
    )(sa, sb)
    # Tiny (N, 128) lane reduction + mean normalization in the wrapper.
    return acc.reshape(N, _LANES).sum(axis=-1) / D


def _pallas_fused_cast_mse(images_a, images_b):
    """Fused cast-to-f32 features + per-image MSE in one HBM pass."""
    N, C, H, W = images_a.shape
    D = C * H * W
    sa, NB, TR = _to_slab(images_a)
    sb, _, _ = _to_slab(images_b)
    R_pad = sa.shape[1]
    nN, nR = N // NB, R_pad // TR
    img_spec = pl.BlockSpec((NB, TR, _LANES), lambda i, r: (i, r, 0))
    fa, fb, acc = pl.pallas_call(
        _fused_cast_mse_kernel,
        out_shape=(jax.ShapeDtypeStruct((N, R_pad, _LANES), FEATURE_DTYPE),
                   jax.ShapeDtypeStruct((N, R_pad, _LANES), FEATURE_DTYPE),
                   jax.ShapeDtypeStruct((nN, NB, _LANES), jnp.float32)),
        grid=(nN, nR),
        in_specs=[img_spec, img_spec],
        out_specs=(img_spec, img_spec,
                   pl.BlockSpec((1, NB, _LANES), lambda i, r: (i, 0, 0))),
        compiler_params=pltpu.CompilerParams(
            dimension_semantics=("parallel", "arbitrary")),
    )(sa, sb)

    def _unpad(f):
        return f.reshape(N, R_pad * _LANES)[:, :D].reshape(N, C, H, W)

    result = acc.reshape(N, _LANES).sum(axis=-1) / D
    return result, _unpad(fa), _unpad(fb)


# ----------------------------------------------------------------------------
# Module port
# ----------------------------------------------------------------------------
class MultiImageMetric:
    def __init__(self, num_batch: int = 1):
        # num_batch only chunks the identity/cast calc_features loop in the
        # reference; the Pallas grid picks bandwidth-optimal chunks instead
        # (identical results). Kept for API fidelity.
        self.num_batch = num_batch

    def __call__(self, images_a, images_b):
        if isinstance(images_a, jnp.ndarray):
            features_a = self._process_tensor(images_a, "images_a")
        elif isinstance(images_a, list):
            features_a = self._process_list(images_a, "images_a")
        else:
            raise ValueError("images_a should be jnp.ndarray or list.")
        if isinstance(images_b, jnp.ndarray):
            features_b = self._process_tensor(images_b, "images_b")
        elif isinstance(images_b, list):
            features_b = self._process_list(images_b, "images_b")
        else:
            raise ValueError("images_b should be jnp.ndarray or list.")
        result = self.calc(features_a, features_b)
        return (result, features_a, features_b)

    def _process_tensor(self, images, name):
        if images.ndim != 4:
            raise ValueError(f"the shape of {name} should be (N, C, H, W).")
        if images.dtype == FEATURE_DTYPE:
            # calc_features is identity and the f32->f32 cast is a no-op: skip
            # the copy kernel entirely (saves a full HBM read + write).
            return images
        return _pallas_cast_features(images)

    def _process_list(self, images, name):
        for image in images:
            if image.ndim != 3:
                raise ValueError(f"the image in list {name} should be (C,H,W).")
        # torch.cat of per-image features requires identical (C,H,W); the list
        # is therefore equivalent to one stacked batch -> single pallas_call
        # instead of one launch per image.
        stacked = jnp.stack(images, axis=0)
        if stacked.dtype == FEATURE_DTYPE:
            return stacked
        return _pallas_cast_features(stacked)

    def calc(self, features_a, features_b):
        # TODO(synk): abstract in the reference module; kept abstract here.
        raise NotImplementedError("calc should be implemented by subclass.")

    def calc_features(self, images):
        return images  # realized inside _cast_kernel / the f32 skip path


class MSEMetric(MultiImageMetric):
    """Demo subclass (per-image MSE) so the abstract forward runs end-to-end."""

    def __call__(self, images_a, images_b):
        if (isinstance(images_a, jnp.ndarray) and isinstance(images_b, jnp.ndarray)
                and images_a.ndim == 4 and images_b.ndim == 4
                and images_a.shape == images_b.shape
                and images_a.dtype != FEATURE_DTYPE):
            # Fused path: one pass reads a/b, writes f32 features and the MSE
            # (avoids re-reading the just-written features from HBM).
            return _pallas_fused_cast_mse(images_a, images_b)
        return super().__call__(images_a, images_b)

    def calc(self, features_a, features_b):
        return _pallas_mse(features_a, features_b)


if __name__ == "__main__":
    key = jax.random.PRNGKey(0)
    ka, kb = jax.random.split(key)
    images_a = jax.random.uniform(ka, (2, 4, 16, 16), dtype=jnp.float32)
    images_b = jax.random.uniform(kb, (2, 4, 16, 16), dtype=jnp.float32)

    metric = MSEMetric(num_batch=1)
    result, fa, fb = metric(images_a, images_b)
    jax.block_until_ready((result, fa, fb))

    # Reference (plain JAX) check.
    ref_fa = images_a.astype(FEATURE_DTYPE)
    ref_fb = images_b.astype(FEATURE_DTYPE)
    ref_res = jnp.mean((ref_fa - ref_fb) ** 2, axis=(1, 2, 3))
    assert fa.shape == (2, 4, 16, 16) and fb.shape == (2, 4, 16, 16)
    assert jnp.allclose(fa, ref_fa)
    assert jnp.allclose(fb, ref_fb)
    assert jnp.allclose(result, ref_res, atol=1e-5)

    # List-input path (stacked into a single batched call).
    res_l, fa_l, _ = metric([images_a[0], images_a[1]], [images_b[0], images_b[1]])
    jax.block_until_ready((res_l, fa_l))
    assert jnp.allclose(fa_l, ref_fa)
    assert jnp.allclose(res_l, ref_res, atol=1e-5)

    # bf16 inputs exercise the fused cast+MSE kernel (widening cast inside).
    a16 = images_a.astype(jnp.bfloat16)
    b16 = images_b.astype(jnp.bfloat16)
    res16, fa16, fb16 = metric(a16, b16)
    jax.block_until_ready((res16, fa16, fb16))
    ref_fa16 = a16.astype(FEATURE_DTYPE)
    ref_fb16 = b16.astype(FEATURE_DTYPE)
    ref_res16 = jnp.mean((ref_fa16 - ref_fb16) ** 2, axis=(1, 2, 3))
    assert fa16.dtype == FEATURE_DTYPE and jnp.allclose(fa16, ref_fa16)
    assert jnp.allclose(fb16, ref_fb16)
    assert jnp.allclose(res16, ref_res16, atol=1e-5)

    # Standalone cast kernel (base-class non-f32 feature path).
    base = MultiImageMetric()
    cast_feats = base._process_tensor(a16, "images_a")
    jax.block_until_ready(cast_feats)
    assert cast_feats.dtype == FEATURE_DTYPE and jnp.allclose(cast_feats, ref_fa16)

    # Non-128-multiple C*H*W exercises the zero-padded lane-dense path.
    ao = jax.random.uniform(ka, (2, 3, 10, 10), dtype=jnp.float32)
    bo = jax.random.uniform(kb, (2, 3, 10, 10), dtype=jnp.float32)
    res_o, _, _ = metric(ao, bo)
    jax.block_until_ready(res_o)
    ref_o = jnp.mean((ao - bo) ** 2, axis=(1, 2, 3))
    assert jnp.allclose(res_o, ref_o, atol=1e-5)

    # Base class keeps the abstract-calc semantics.
    try:
        MultiImageMetric()(images_a, images_b)
        raise AssertionError("base-class calc should raise NotImplementedError")
    except NotImplementedError:
        pass

    print("KERNEL_OK")
</pallas_src>

<mosaic_0001>
module attributes {stable_mosaic.version = 11 : i64} {
  func.func @_mse_kernel(%arg0: i32, %arg1: i32, %arg2: memref<2x8x128xf32, #tpu.memory_space<vmem>>, %arg3: memref<2x8x128xf32, #tpu.memory_space<vmem>>, %arg4: memref<1x2x128xf32, #tpu.memory_space<vmem>>) attributes {dimension_semantics = [#tpu.dimension_semantics<parallel>, #tpu.dimension_semantics<arbitrary>], iteration_bounds = array<i64: 1, 1>, scalar_prefetch = 0 : i64, scratch_operands = 0 : i64, tpu.core_type = #tpu.core_type<tc>, window_params = [{transform_indices = @transform_0, window_bounds = array<i64: 2, 8, 128>}, {transform_indices = @transform_1, window_bounds = array<i64: 2, 8, 128>}, {transform_indices = @transform_2, window_bounds = array<i64: 1, 2, 128>}]} {
    %c0_i32 = arith.constant 0 : i32
    %0 = arith.cmpi eq, %arg1, %c0_i32 : i32
    %1 = arith.extui %0 : i1 to i32
    %c0_i32_0 = arith.constant 0 : i32
    %2 = arith.cmpi ne, %1, %c0_i32_0 : i32
    scf.if %2 {
      %cst_12 = arith.constant 0.000000e+00 : f32
      %12 = vector.broadcast %cst_12 : f32 to vector<1x2x128xf32>
      %c0_13 = arith.constant 0 : index
      %c0_14 = arith.constant 0 : index
      %c0_15 = arith.constant 0 : index
      %13 = vector.load %arg4[%c0_13, %c0_14, %c0_15] : memref<1x2x128xf32, #tpu.memory_space<vmem>>, vector<1x2x128xf32>
      tpu.vector_store %arg4[%c0_13, %c0_14, %c0_15], %12 {strides = array<i32>} : memref<1x2x128xf32, #tpu.memory_space<vmem>>, vector<1x2x128xf32>,
    } else {
    }
    %c0 = arith.constant 0 : index
    %c0_1 = arith.constant 0 : index
    %c0_2 = arith.constant 0 : index
    %3 = vector.load %arg2[%c0, %c0_1, %c0_2] : memref<2x8x128xf32, #tpu.memory_space<vmem>>, vector<2x8x128xf32>
    %c0_3 = arith.constant 0 : index
    %c0_4 = arith.constant 0 : index
    %c0_5 = arith.constant 0 : index
    %4 = vector.load %arg3[%c0_3, %c0_4, %c0_5] : memref<2x8x128xf32, #tpu.memory_space<vmem>>, vector<2x8x128xf32>
    %5 = arith.subf %3, %4 : vector<2x8x128xf32>
    %c0_6 = arith.constant 0 : index
    %c0_7 = arith.constant 0 : index
    %c0_8 = arith.constant 0 : index
    %6 = vector.load %arg4[%c0_6, %c0_7, %c0_8] : memref<1x2x128xf32, #tpu.memory_space<vmem>>, vector<1x2x128xf32>
    %7 = arith.mulf %5, %5 : vector<2x8x128xf32>
    %cst = arith.constant dense<0.000000e+00> : vector<2x128xf32>
    %8 = vector.multi_reduction <add>, %7, %cst [1] : vector<2x8x128xf32> to vector<2x128xf32>
    %9 = vector.shape_cast %8 : vector<2x128xf32> to vector<1x2x128xf32>
    %10 = arith.addf %6, %9 : vector<1x2x128xf32>
    %c0_9 = arith.constant 0 : index
    %c0_10 = arith.constant 0 : index
    %c0_11 = arith.constant 0 : index
    %11 = vector.load %arg4[%c0_9, %c0_10, %c0_11] : memref<1x2x128xf32, #tpu.memory_space<vmem>>, vector<1x2x128xf32>
    tpu.vector_store %arg4[%c0_9, %c0_10, %c0_11], %10 {strides = array<i32>} : memref<1x2x128xf32, #tpu.memory_space<vmem>>, vector<1x2x128xf32>,
    return
  }
  func.func @transform_0(%arg0: i32, %arg1: i32) -> (i32, i32, i32) {
    %c0_i32 = arith.constant 0 : i32
    %c0_i32_0 = arith.constant 0 : i32
    return %arg0, %arg1, %c0_i32 : i32, i32, i32
  }
  func.func @transform_1(%arg0: i32, %arg1: i32) -> (i32, i32, i32) {
    %c0_i32 = arith.constant 0 : i32
    %c0_i32_0 = arith.constant 0 : i32
    return %arg0, %arg1, %c0_i32 : i32, i32, i32
  }
  func.func @transform_2(%arg0: i32, %arg1: i32) -> (i32, i32, i32) {
    %c0_i32 = arith.constant 0 : i32
    %c0_i32_0 = arith.constant 0 : i32
    %c0_i32_1 = arith.constant 0 : i32
    return %arg0, %c0_i32, %c0_i32_0 : i32, i32, i32
  }
}

</mosaic_0001>

<llo_original>
// kernel: tpu_custom_call.1
$region0: #{tpu_custom_call.1}
  #allocation0 [shape = 'u32[]', space=smem, size = 0x4, offset = 0x4, fixed_abs, tag = 'smem constant byte address 0x4 - core index']
  #allocation1 [shape = 'u32[144,128]{1,0:T(1,128)}', space=vmem, size = 0x12000, scoped, tag = 'internal scratch']
  %s0 = inlined_call_operand.hbm [shape: f32[2,8,128], index: 0, kind: input, shape index: {}]
  %s1 = inlined_call_operand.hbm [shape: f32[2,8,128], index: 1, kind: input, shape index: {}]
  %s2 = inlined_call_operand.hbm [shape: f32[1,2,128], index: 2, kind: output, shape index: {}]
  %s3 = sld [smem:[#allocation0]]
  $region30: #{tpu_custom_call.1} parent=0
    _
  %s5 = ssub.s32 1, %s3
  %s6 = scalar_select 0, %s5, %s3
  $region1: #{tpu_custom_call.1} parent=0
    #allocation2 [shape = 'u8[8192]{0}', space=vmem, size = 0x2000, scoped, tag = 'input window, operand 0, single buffered']
    #allocation3 [shape = 's32[1]{0}', space=sflag, size = 0x4, scoped, tag = 'scoped memory for tpu_custom_call.1']
    #allocation4 [shape = 's32[1]{0}', space=sflag, size = 0x4, scoped, tag = 'scoped memory for tpu_custom_call.1']
    #allocation5 [shape = 'u8[8192]{0}', space=vmem, size = 0x2000, scoped, tag = 'input window, operand 1, single buffered']
    #allocation6 [shape = 's32[1]{0}', space=sflag, size = 0x4, scoped, tag = 'scoped memory for tpu_custom_call.1']
    #allocation7 [shape = 'u8[1024]{0}', space=vmem, size = 0x400, scoped, tag = 'output window, operand 0, single buffered']
    %7 = vsyncpa [#allocation3], 0
    %8 = vsyncpa [#allocation6], 0
    %9 = vsyncpa [#allocation4], 0
    // Predicated region
    $region2: #{tpu_custom_call.1} parent=1 // pred_check
      _
    $region3: #{tpu_custom_call.1} parent=1 // pred_check_branch
      %11 = sbr.rel (0) target = $region5
    $region4: #{tpu_custom_call.1} parent=1 // pred_region
      %s13 = ssub.s32 256, 256
      %14 = vsyncadd [#allocation3], %s13
      %s15 = sshll.u32 [#allocation2], 4
      %s16 = int_to_ptr.vmem [resolvable:$true] %s15
      %21 = dma.hbm_to_vmem [thread:$0]  %s0, 256, %s16, [#allocation3], 128, 128, 8
    $region5: #{tpu_custom_call.1} parent=1 // pred_fallthru
      _
    // Predicated region
    $region6: #{tpu_custom_call.1} parent=1 // pred_check
      _
    $region7: #{tpu_custom_call.1} parent=1 // pred_check_branch
      %23 = sbr.rel (0) target = $region9
    $region8: #{tpu_custom_call.1} parent=1 // pred_region
      %s25 = ssub.s32 256, 256
      %26 = vsyncadd [#allocation6], %s25
      %s27 = sshll.u32 [#allocation5], 4
      %s28 = int_to_ptr.vmem [resolvable:$true] %s27
      %33 = dma.hbm_to_vmem [thread:$0]  %s1, 256, %s28, [#allocation6], 128, 128, 8
    $region9: #{tpu_custom_call.1} parent=1 // pred_fallthru
      _
    // Predicated region
    $region10: #{tpu_custom_call.1} parent=1 // pred_check
      _
    $region11: #{tpu_custom_call.1} parent=1 // pred_check_branch
      %35 = sbr.rel (0) target = $region13
    $region12: #{tpu_custom_call.1} parent=1 // pred_region
      %36 = dma.done [#allocation3], 256
    $region13: #{tpu_custom_call.1} parent=1 // pred_fallthru
      _
    // Predicated region
    $region14: #{tpu_custom_call.1} parent=1 // pred_check
      _
    $region15: #{tpu_custom_call.1} parent=1 // pred_check_branch
      %38 = sbr.rel (0) target = $region17
    $region16: #{tpu_custom_call.1} parent=1 // pred_region
      %39 = dma.done [#allocation6], 256
    $region17: #{tpu_custom_call.1} parent=1 // pred_fallthru
      _
    %p40 = scmp.eq.s32.totalorder 0, 0
    // Predicated region
    $region18: #{tpu_custom_call.1} parent=1 // pred_check
      %p41 = pneg %p40
    $region19: #{tpu_custom_call.1} parent=1 // pred_check_branch
      %43 = sbr.rel (%p41) target = $region21
    $region20: #{tpu_custom_call.1} parent=1 // pred_region
      %44 = vst [vmem:[#allocation7] sm:$0x3] 0.0
    $region21: #{tpu_custom_call.1} parent=1 // pred_fallthru
      _
    %v45 = vld [vmem:[#allocation2] sm:$0xff]
    %v46 = vld [vmem:[#allocation2 + $0x8] sm:$0xff]
    %v47 = vld [vmem:[#allocation5] sm:$0xff]
    %v48 = vld [vmem:[#allocation5 + $0x8] sm:$0xff]
    %v49 = vsub.f32 %v45, %v47
    %v50 = vsub.f32 %v46, %v48
    %v51 = vld [vmem:[#allocation7] sm:$0x3]
    %v52 = vmul.f32 %v49, %v49
    %v53 = vmul.f32 %v50, %v50
    %v54 = vrot.slane %v52, 4
    %v55 = vadd.f32 %v52, %v54
    %v56 = vrot.slane %v55, 2
    %v57 = vadd.f32 %v55, %v56
    %v58 = vrot.slane %v57, 1
    %v59 = vadd.f32 %v57, %v58
    %v60 = vrot.slane %v53, 4
    %v61 = vadd.f32 %v53, %v60
    %v62 = vrot.slane %v61, 2
    %v63 = vadd.f32 %v61, %v62
    %v64 = vrot.slane %v63, 1
    %v65 = vadd.f32 %v63, %v64
    %vm68 = vcmask 1041409
    %v69 = vsel %vm68, %v65, %v59
    %v71 = vadd.f32 %v51, %v69
    %72 = vst [vmem:[#allocation7] sm:$0x3] %v71
    // Predicated region
    $region22: #{tpu_custom_call.1} parent=1 // pred_check
      _
    $region23: #{tpu_custom_call.1} parent=1 // pred_check_branch
      %74 = sbr.rel (0) target = $region25
    $region24: #{tpu_custom_call.1} parent=1 // pred_region
      %s76 = ssub.s32 32, 32
      %77 = vsyncadd [#allocation4], %s76
      %s79 = sshll.u32 [#allocation7], 4
      %s80 = int_to_ptr.vmem [resolvable:$true] %s79
      %82 = dma.vmem_to_hbm [thread:$0]  %s80, 32, %s2, [#allocation4]
    $region25: #{tpu_custom_call.1} parent=1 // pred_fallthru
      _
    // Predicated region
    $region26: #{tpu_custom_call.1} parent=1 // pred_check
      _
    $region27: #{tpu_custom_call.1} parent=1 // pred_check_branch
      %84 = sbr.rel (0) target = $region29
    $region28: #{tpu_custom_call.1} parent=1 // pred_region
      %85 = dma.done [#allocation4], 32
    $region29: #{tpu_custom_call.1} parent=1 // pred_fallthru
      _
    %86 = vsyncpa [#allocation3], 1
    %87 = vsyncpa [#allocation6], 1
    %88 = vsyncpa [#allocation4], 1

</llo_original>
